<compile_context>
chip_gen: v7x
topology: tpu7x:2x2x1
jax: 0.10.0
libtpu: 0.0.40
codegen_flags: <defaults>
</compile_context>

<pallas_src>
import functools

import jax
import jax.numpy as jnp
from jax.experimental import pallas as pl
from jax.experimental.pallas import tpu as pltpu


def att_kernel(x_ref, mask_ref, wqkv_ref, bqkv_ref, wo_ref, bo_ref, out_ref,
               *, bblk, n_node, hidden_dim):
    H = hidden_dim

    # Fused projections: one (BBLK*N, din) @ (din, 3H) matmul, f32 accumulate.
    proj = jnp.dot(x_ref[...], wqkv_ref[...],
                   preferred_element_type=jnp.float32) + bqkv_ref[...]
    proj = jnp.maximum(proj, 0.0)                       # relu, f32 (BBLK*N, 3H)

    # Split fused QKV and re-expose the batch dim for the attention einsums.
    v = proj[:, 0:H].reshape(bblk, n_node, H).astype(jnp.bfloat16)
    q = proj[:, H:2 * H].reshape(bblk, n_node, H).astype(jnp.bfloat16)
    k = proj[:, 2 * H:3 * H].reshape(bblk, n_node, H).astype(jnp.bfloat16)

    # scores = q k^T : contract the feature axis directly (no k transpose).
    scores = jnp.einsum("bqd,bkd->bqk", q, k,
                        preferred_element_type=jnp.float32)    # (BBLK, N, N)

    # Binary mask -> single select (exactly scores*mask - 9e15*(1-mask)).
    logits = jnp.where(mask_ref[...] != 0.0, scores, jnp.float32(-9e15))

    # Softmax over the key axis (f32; exp on EUP, approx reciprocal on EUP).
    m = jnp.max(logits, axis=-1, keepdims=True)
    e = jnp.exp(logits - m)
    att = e * pl.reciprocal(jnp.sum(e, axis=-1, keepdims=True), approx=True)

    # out = relu((att v) Wout + bout)
    o = jnp.einsum("bqk,bkd->bqd", att.astype(jnp.bfloat16), v,
                   preferred_element_type=jnp.float32)         # (BBLK, N, H)
    o = o.reshape(bblk * n_node, H).astype(jnp.bfloat16)
    out = jnp.dot(o, wo_ref[...], preferred_element_type=jnp.float32) + bo_ref[...]
    out_ref[...] = jnp.maximum(out, 0.0).astype(out_ref.dtype)


def att_model_forward(x, mask, params, *, bblk=None):
    """x: (B, N, din) f32, mask: (B, N, N) f32 binary -> (B, N, dout) f32."""
    B, N, din = x.shape
    wv, bv, wq, bq, wk, bk, wo, bo = params
    H = wv.shape[1]
    dout = wo.shape[1]

    if bblk is None:
        bblk = B                      # all batch elements in one grid step
    assert B % bblk == 0
    grid_b = B // bblk
    rows = bblk * N

    # Fuse projection weights into a single (din, 3H) MXU operand; bf16 MXU
    # inputs, f32 biases (added to the f32 accumulator inside the kernel).
    w_qkv = jnp.concatenate([wv, wq, wk], axis=1).astype(jnp.bfloat16)
    b_qkv = jnp.concatenate([bv, bq, bk], axis=1).astype(jnp.float32)
    w_out = wo.astype(jnp.bfloat16)
    b_out = bo.astype(jnp.float32)

    x_flat = x.reshape(B * N, din).astype(jnp.bfloat16)
    mask_f32 = mask.astype(jnp.float32)

    kernel = functools.partial(att_kernel, bblk=bblk, n_node=N, hidden_dim=H)

    out_flat = pl.pallas_call(
        kernel,
        out_shape=jax.ShapeDtypeStruct((B * N, dout), jnp.float32),
        grid_spec=pltpu.PrefetchScalarGridSpec(
            num_scalar_prefetch=0,
            grid=(grid_b,),
            in_specs=[
                pl.BlockSpec((rows, din), lambda b: (b, 0)),       # x (B*N rows)
                pl.BlockSpec((bblk, N, N), lambda b: (b, 0, 0)),   # mask
                pl.BlockSpec((din, 3 * H), lambda b: (0, 0)),      # W_qkv
                pl.BlockSpec((1, 3 * H), lambda b: (0, 0)),        # b_qkv
                pl.BlockSpec((H, dout), lambda b: (0, 0)),         # W_out
                pl.BlockSpec((1, dout), lambda b: (0, 0)),         # b_out
            ],
            out_specs=pl.BlockSpec((rows, dout), lambda b: (b, 0)),
        ),
        compiler_params=pltpu.CompilerParams(
            dimension_semantics=("parallel",)),
    )(x_flat, mask_f32, w_qkv, b_qkv, w_out, b_out)

    return out_flat.reshape(B, N, dout)


def init_params(key, din, hidden_dim, dout):
    """Deterministic synthetic init. Weights stored as (in, out)."""
    ks = jax.random.split(key, 8)
    scale_in = 1.0 / jnp.sqrt(din)
    scale_h = 1.0 / jnp.sqrt(hidden_dim)
    wv = jax.random.uniform(ks[0], (din, hidden_dim), jnp.float32, -scale_in, scale_in)
    bv = jax.random.uniform(ks[1], (1, hidden_dim), jnp.float32, -scale_in, scale_in)
    wq = jax.random.uniform(ks[2], (din, hidden_dim), jnp.float32, -scale_in, scale_in)
    bq = jax.random.uniform(ks[3], (1, hidden_dim), jnp.float32, -scale_in, scale_in)
    wk = jax.random.uniform(ks[4], (din, hidden_dim), jnp.float32, -scale_in, scale_in)
    bk = jax.random.uniform(ks[5], (1, hidden_dim), jnp.float32, -scale_in, scale_in)
    wo = jax.random.uniform(ks[6], (hidden_dim, dout), jnp.float32, -scale_h, scale_h)
    bo = jax.random.uniform(ks[7], (1, dout), jnp.float32, -scale_h, scale_h)
    return (wv, bv, wq, bq, wk, bk, wo, bo)


def reference_forward(x, mask, params):
    """Pure-f32 JAX reference matching the PyTorch module exactly."""
    wv, bv, wq, bq, wk, bk, wo, bo = params
    v = jax.nn.relu(x @ wv + bv)
    q = jax.nn.relu(x @ wq + bq)
    k = jax.nn.relu(x @ wk + bk)
    scores = jnp.einsum("bnd,bmd->bnm", q, k)
    logits = scores * mask - 9000000000000000.0 * (1.0 - mask)
    att = jax.nn.softmax(logits, axis=2)
    out = jnp.einsum("bnm,bmd->bnd", att, v)
    return jax.nn.relu(out @ wo + bo)


if __name__ == "__main__":
    key = jax.random.PRNGKey(0)
    B, N, din, hidden_dim, dout = 2, 8, 16, 32, 16

    kx, km, kp = jax.random.split(key, 3)
    x = jax.random.normal(kx, (B, N, din), jnp.float32)
    # binary adjacency-style mask with self-connections, like DGN uses
    mask = (jax.random.uniform(km, (B, N, N)) > 0.5).astype(jnp.float32)
    mask = jnp.maximum(mask, jnp.eye(N, dtype=jnp.float32)[None])

    params = init_params(kp, din, hidden_dim, dout)

    out = att_model_forward(x, mask, params)
    out = jax.block_until_ready(out)

    ref = reference_forward(x, mask, params)
    assert out.shape == (B, N, dout)
    # Tolerance reflects bf16 MXU inputs (f32 accumulation) vs. the f32 reference.
    assert jnp.allclose(out, ref, atol=5e-2, rtol=5e-2), "mismatch vs JAX reference"

    print("KERNEL_OK")
</pallas_src>

<mosaic_0001>
module attributes {stable_mosaic.version = 11 : i64} {
  func.func @att_kernel(%arg0: i32, %arg1: memref<16x16xbf16, #tpu.memory_space<vmem>>, %arg2: memref<2x8x8xf32, #tpu.memory_space<vmem>>, %arg3: memref<16x96xbf16, #tpu.memory_space<vmem>>, %arg4: memref<1x96xf32, #tpu.memory_space<vmem>>, %arg5: memref<32x16xbf16, #tpu.memory_space<vmem>>, %arg6: memref<1x16xf32, #tpu.memory_space<vmem>>, %arg7: memref<16x16xf32, #tpu.memory_space<vmem>>) attributes {dimension_semantics = [#tpu.dimension_semantics<parallel>], iteration_bounds = array<i64: 1>, scalar_prefetch = 0 : i64, scratch_operands = 0 : i64, tpu.core_type = #tpu.core_type<tc>, window_params = [{transform_indices = @transform_0, window_bounds = array<i64: 16, 16>}, {transform_indices = @transform_1, window_bounds = array<i64: 2, 8, 8>}, {pipeline_mode = #tpu.pipeline_mode<synchronous>, transform_indices = @transform_2, window_bounds = array<i64: 16, 96>}, {pipeline_mode = #tpu.pipeline_mode<synchronous>, transform_indices = @transform_3, window_bounds = array<i64: 1, 96>}, {pipeline_mode = #tpu.pipeline_mode<synchronous>, transform_indices = @transform_4, window_bounds = array<i64: 32, 16>}, {pipeline_mode = #tpu.pipeline_mode<synchronous>, transform_indices = @transform_5, window_bounds = array<i64: 1, 16>}, {transform_indices = @transform_6, window_bounds = array<i64: 16, 16>}]} {
    %c0 = arith.constant 0 : index
    %c0_0 = arith.constant 0 : index
    %0 = vector.load %arg1[%c0, %c0_0] : memref<16x16xbf16, #tpu.memory_space<vmem>>, vector<16x16xbf16>
    %c0_1 = arith.constant 0 : index
    %c0_2 = arith.constant 0 : index
    %1 = vector.load %arg3[%c0_1, %c0_2] : memref<16x96xbf16, #tpu.memory_space<vmem>>, vector<16x96xbf16>
    %cst = arith.constant dense<0.000000e+00> : vector<16x96xf32>
    %2 = tpu.matmul %0, %1, %cst {dimension_numbers = #tpu.dot_dimension_numbers<[1], [0], [0], [1], [0, 0, 1, 1], [], []>} : vector<16x16xbf16>, vector<16x96xbf16>, vector<16x96xf32> -> vector<16x96xf32>
    %c0_3 = arith.constant 0 : index
    %c0_4 = arith.constant 0 : index
    %3 = vector.load %arg4[%c0_3, %c0_4] : memref<1x96xf32, #tpu.memory_space<vmem>>, vector<1x96xf32>
    %4 = vector.broadcast %3 : vector<1x96xf32> to vector<16x96xf32>
    %5 = arith.addf %2, %4 : vector<16x96xf32>
    %cst_5 = arith.constant 0.000000e+00 : f32
    %6 = vector.broadcast %cst_5 : f32 to vector<16x96xf32>
    %7 = arith.maximumf %5, %6 : vector<16x96xf32>
    %8 = vector.extract_strided_slice %7 {offsets = [0, 0], sizes = [16, 32], strides = [1, 1]} : vector<16x96xf32> to vector<16x32xf32>
    %9 = vector.shape_cast %8 : vector<16x32xf32> to vector<2x8x32xf32>
    %10 = arith.truncf %9 : vector<2x8x32xf32> to vector<2x8x32xbf16>
    %11 = vector.extract_strided_slice %7 {offsets = [0, 32], sizes = [16, 32], strides = [1, 1]} : vector<16x96xf32> to vector<16x32xf32>
    %12 = vector.shape_cast %11 : vector<16x32xf32> to vector<2x8x32xf32>
    %13 = arith.truncf %12 : vector<2x8x32xf32> to vector<2x8x32xbf16>
    %14 = vector.extract_strided_slice %7 {offsets = [0, 64], sizes = [16, 32], strides = [1, 1]} : vector<16x96xf32> to vector<16x32xf32>
    %15 = vector.shape_cast %14 : vector<16x32xf32> to vector<2x8x32xf32>
    %16 = arith.truncf %15 : vector<2x8x32xf32> to vector<2x8x32xbf16>
    "tpu.trace_start"() <{level = 10 : i32, message = "bqd,bkd->bqk"}> : () -> ()
    %cst_6 = arith.constant dense<0.000000e+00> : vector<2x8x8xf32>
    %17 = tpu.matmul %13, %16, %cst_6 {dimension_numbers = #tpu.dot_dimension_numbers<[2], [2], [1], [1], [0, 0, 0, 1, 1, 1], [0], [0]>} : vector<2x8x32xbf16>, vector<2x8x32xbf16>, vector<2x8x8xf32> -> vector<2x8x8xf32>
    "tpu.trace_stop"() : () -> ()
    %c0_7 = arith.constant 0 : index
    %c0_8 = arith.constant 0 : index
    %c0_9 = arith.constant 0 : index
    %18 = vector.load %arg2[%c0_7, %c0_8, %c0_9] : memref<2x8x8xf32, #tpu.memory_space<vmem>>, vector<2x8x8xf32>
    %cst_10 = arith.constant 0.000000e+00 : f32
    %19 = vector.broadcast %cst_10 : f32 to vector<2x8x8xf32>
    %20 = arith.cmpf one, %18, %19 : vector<2x8x8xf32>
    %cst_11 = arith.constant -9.000000e+15 : f32
    %21 = vector.broadcast %cst_11 : f32 to vector<2x8x8xf32>
    %22 = arith.select %20, %17, %21 : vector<2x8x8xi1>, vector<2x8x8xf32>
    %cst_12 = arith.constant dense<0xFF800000> : vector<2x8xf32>
    %23 = vector.multi_reduction <maximumf>, %22, %cst_12 [2] : vector<2x8x8xf32> to vector<2x8xf32>
    %24 = vector.shape_cast %23 : vector<2x8xf32> to vector<2x8x1xf32>
    %25 = vector.broadcast %24 : vector<2x8x1xf32> to vector<2x8x8xf32>
    %26 = arith.subf %22, %25 : vector<2x8x8xf32>
    %27 = math.exp %26 : vector<2x8x8xf32>
    %cst_13 = arith.constant dense<0.000000e+00> : vector<2x8xf32>
    %28 = vector.multi_reduction <add>, %27, %cst_13 [2] : vector<2x8x8xf32> to vector<2x8xf32>
    %29 = vector.shape_cast %28 : vector<2x8xf32> to vector<2x8x1xf32>
    %30 = tpu.reciprocal %29 {approx = true} : vector<2x8x1xf32> -> vector<2x8x1xf32>
    %31 = vector.broadcast %30 : vector<2x8x1xf32> to vector<2x8x8xf32>
    %32 = arith.mulf %27, %31 : vector<2x8x8xf32>
    %33 = arith.truncf %32 : vector<2x8x8xf32> to vector<2x8x8xbf16>
    "tpu.trace_start"() <{level = 10 : i32, message = "bqk,bkd->bqd"}> : () -> ()
    %cst_14 = arith.constant dense<0.000000e+00> : vector<2x8x32xf32>
    %34 = tpu.matmul %33, %10, %cst_14 {dimension_numbers = #tpu.dot_dimension_numbers<[2], [1], [1], [2], [0, 0, 0, 1, 1, 2], [0], [0]>} : vector<2x8x8xbf16>, vector<2x8x32xbf16>, vector<2x8x32xf32> -> vector<2x8x32xf32>
    "tpu.trace_stop"() : () -> ()
    %35 = vector.shape_cast %34 : vector<2x8x32xf32> to vector<16x32xf32>
    %36 = arith.truncf %35 : vector<16x32xf32> to vector<16x32xbf16>
    %c0_15 = arith.constant 0 : index
    %c0_16 = arith.constant 0 : index
    %37 = vector.load %arg5[%c0_15, %c0_16] : memref<32x16xbf16, #tpu.memory_space<vmem>>, vector<32x16xbf16>
    %cst_17 = arith.constant dense<0.000000e+00> : vector<16x16xf32>
    %38 = tpu.matmul %36, %37, %cst_17 {dimension_numbers = #tpu.dot_dimension_numbers<[1], [0], [0], [1], [0, 0, 1, 1], [], []>} : vector<16x32xbf16>, vector<32x16xbf16>, vector<16x16xf32> -> vector<16x16xf32>
    %c0_18 = arith.constant 0 : index
    %c0_19 = arith.constant 0 : index
    %39 = vector.load %arg6[%c0_18, %c0_19] : memref<1x16xf32, #tpu.memory_space<vmem>>, vector<1x16xf32>
    %40 = vector.broadcast %39 : vector<1x16xf32> to vector<16x16xf32>
    %41 = arith.addf %38, %40 : vector<16x16xf32>
    %cst_20 = arith.constant 0.000000e+00 : f32
    %42 = vector.broadcast %cst_20 : f32 to vector<16x16xf32>
    %43 = arith.maximumf %41, %42 : vector<16x16xf32>
    %c0_21 = arith.constant 0 : index
    %c0_22 = arith.constant 0 : index
    %44 = vector.load %arg7[%c0_21, %c0_22] : memref<16x16xf32, #tpu.memory_space<vmem>>, vector<16x16xf32>
    tpu.vector_store %arg7[%c0_21, %c0_22], %43 {strides = array<i32>} : memref<16x16xf32, #tpu.memory_space<vmem>>, vector<16x16xf32>,
    return
  }
  func.func @transform_0(%arg0: i32) -> (i32, i32) {
    %c0_i32 = arith.constant 0 : i32
    %c0_i32_0 = arith.constant 0 : i32
    return %arg0, %c0_i32 : i32, i32
  }
  func.func @transform_1(%arg0: i32) -> (i32, i32, i32) {
    %c0_i32 = arith.constant 0 : i32
    %c0_i32_0 = arith.constant 0 : i32
    %c0_i32_1 = arith.constant 0 : i32
    return %arg0, %c0_i32, %c0_i32_0 : i32, i32, i32
  }
  func.func @transform_2(%arg0: i32) -> (i32, i32) {
    %c0_i32 = arith.constant 0 : i32
    %c0_i32_0 = arith.constant 0 : i32
    %c0_i32_1 = arith.constant 0 : i32
    return %c0_i32, %c0_i32_0 : i32, i32
  }
  func.func @transform_3(%arg0: i32) -> (i32, i32) {
    %c0_i32 = arith.constant 0 : i32
    %c0_i32_0 = arith.constant 0 : i32
    %c0_i32_1 = arith.constant 0 : i32
    return %c0_i32, %c0_i32_0 : i32, i32
  }
  func.func @transform_4(%arg0: i32) -> (i32, i32) {
    %c0_i32 = arith.constant 0 : i32
    %c0_i32_0 = arith.constant 0 : i32
    %c0_i32_1 = arith.constant 0 : i32
    return %c0_i32, %c0_i32_0 : i32, i32
  }
  func.func @transform_5(%arg0: i32) -> (i32, i32) {
    %c0_i32 = arith.constant 0 : i32
    %c0_i32_0 = arith.constant 0 : i32
    %c0_i32_1 = arith.constant 0 : i32
    return %c0_i32, %c0_i32_0 : i32, i32
  }
  func.func @transform_6(%arg0: i32) -> (i32, i32) {
    %c0_i32 = arith.constant 0 : i32
    %c0_i32_0 = arith.constant 0 : i32
    return %arg0, %c0_i32 : i32, i32
  }
}

</mosaic_0001>

<llo_original>
// kernel: tpu_custom_call.1
$region0: #{tpu_custom_call.1}
  #allocation0 [shape = 'u32[]', space=smem, size = 0x4, offset = 0x4, fixed_abs, tag = 'smem constant byte address 0x4 - core index']
  #allocation1 [shape = 'u32[144,128]{1,0:T(1,128)}', space=vmem, size = 0x12000, scoped, tag = 'internal scratch']
  %s0 = inlined_call_operand.vmem [shape: bf16[16,16], index: 0, kind: input, shape index: {}]
  %s1 = inlined_call_operand.vmem [shape: f32[2,8,8], index: 1, kind: input, shape index: {}]
  %s2 = inlined_call_operand.hbm [shape: bf16[16,96], index: 2, kind: input, shape index: {}]
  %s3 = inlined_call_operand.vmem [shape: f32[1,96], index: 3, kind: input, shape index: {}]
  %s4 = inlined_call_operand.vmem [shape: bf16[32,16], index: 4, kind: input, shape index: {}]
  %s5 = inlined_call_operand.vmem [shape: f32[1,16], index: 5, kind: input, shape index: {}]
  %s6 = inlined_call_operand.hbm [shape: f32[16,16], index: 6, kind: output, shape index: {}]
  %s7 = sld [smem:[#allocation0]]
  $region38: #{tpu_custom_call.1} parent=0
    _
  %s9 = ssub.s32 1, %s7
  %s10 = scalar_select 0, %s9, %s7
  $region1: #{tpu_custom_call.1} parent=0
    #allocation2 [shape = 'u8[4096]{0}', space=vmem, size = 0x1000, scoped, tag = 'input window, operand 2, single buffered']
    #allocation3 [shape = 's32[1]{0}', space=sflag, size = 0x4, scoped, tag = 'scoped memory for tpu_custom_call.1']
    #allocation4 [shape = 's32[1]{0}', space=sflag, size = 0x4, scoped, tag = 'scoped memory for tpu_custom_call.1']
    #allocation5 [shape = 'u8[8192]{0}', space=vmem, size = 0x2000, scoped, tag = 'output window, operand 0, single buffered']
    %11 = vsyncpa [#allocation3], 0
    %12 = vsyncpa [#allocation4], 0
    // Predicated region
    $region2: #{tpu_custom_call.1} parent=1 // pred_check
      _
    $region3: #{tpu_custom_call.1} parent=1 // pred_check_branch
      %14 = sbr.rel (0) target = $region5
    $region4: #{tpu_custom_call.1} parent=1 // pred_region
      _
    $region5: #{tpu_custom_call.1} parent=1 // pred_fallthru
      _
    // Predicated region
    $region6: #{tpu_custom_call.1} parent=1 // pred_check
      _
    $region7: #{tpu_custom_call.1} parent=1 // pred_check_branch
      %16 = sbr.rel (0) target = $region9
    $region8: #{tpu_custom_call.1} parent=1 // pred_region
      _
    $region9: #{tpu_custom_call.1} parent=1 // pred_fallthru
      _
    // Predicated region
    $region10: #{tpu_custom_call.1} parent=1 // pred_check
      _
    $region11: #{tpu_custom_call.1} parent=1 // pred_check_branch
      %18 = sbr.rel (0) target = $region13
    $region12: #{tpu_custom_call.1} parent=1 // pred_region
      %s20 = ssub.s32 128, 128
      %21 = vsyncadd [#allocation3], %s20
      %s22 = sshll.u32 [#allocation2], 4
      %s23 = int_to_ptr.vmem [resolvable:$true] %s22
      %28 = dma.hbm_to_vmem [thread:$0]  %s2, 128, %s23, [#allocation3], 64, 64, 4
    $region13: #{tpu_custom_call.1} parent=1 // pred_fallthru
      _
    // Predicated region
    $region14: #{tpu_custom_call.1} parent=1 // pred_check
      _
    $region15: #{tpu_custom_call.1} parent=1 // pred_check_branch
      %30 = sbr.rel (0) target = $region17
    $region16: #{tpu_custom_call.1} parent=1 // pred_region
      _
    $region17: #{tpu_custom_call.1} parent=1 // pred_fallthru
      _
    // Predicated region
    $region18: #{tpu_custom_call.1} parent=1 // pred_check
      _
    $region19: #{tpu_custom_call.1} parent=1 // pred_check_branch
      %32 = sbr.rel (0) target = $region21
    $region20: #{tpu_custom_call.1} parent=1 // pred_region
      _
    $region21: #{tpu_custom_call.1} parent=1 // pred_fallthru
      _
    // Predicated region
    $region22: #{tpu_custom_call.1} parent=1 // pred_check
      _
    $region23: #{tpu_custom_call.1} parent=1 // pred_check_branch
      %34 = sbr.rel (0) target = $region25
    $region24: #{tpu_custom_call.1} parent=1 // pred_region
      _
    $region25: #{tpu_custom_call.1} parent=1 // pred_fallthru
      _
    // Predicated region
    $region26: #{tpu_custom_call.1} parent=1 // pred_check
      _
    $region27: #{tpu_custom_call.1} parent=1 // pred_check_branch
      %36 = sbr.rel (0) target = $region29
    $region28: #{tpu_custom_call.1} parent=1 // pred_region
      %37 = dma.done [#allocation3], 128
    $region29: #{tpu_custom_call.1} parent=1 // pred_fallthru
      _
    %v39 = vld [vmem:[%s0] sm:$0xf]
    %v40 = vld [vmem:[%s0 + $0x4] sm:$0xf]
    %v41 = vld [vmem:[#allocation2] sm:$0xf]
    %v42 = vld [vmem:[#allocation2 + $0x4] sm:$0xf]
    %v43 = vld [vmem:[%s3] sm:$0x1]
    %v45 = vlaneseq
    %v46 = vshrl.u32 %v45, 7
    %v47 = vsub.s32 0, %v46
    %v48 = vrot.slane %v43, %v47
    %v52 = vunpack.c.l.b16 %v39
    %v53 = vunpack.c.l.b16 %v40
    %v54 = vpack.c.b16 %v53, %v52
    %v57 = vunpack.c.l.b16 %v41
    %v58 = vunpack.c.l.b16 %v42
    %v59 = vpack.c.b16 %v58, %v57
    %vm61 = vcmask 130048
    %v63 = vsel %vm61, %v54, 0
    %65 = vmatprep.subr.bf16.mxu0 0
    %66 = vmatpush1.bf16.msra.mxu0 %v59
    %67 = vmatprep.subr.bf16.mxu0 0
    %68 = vmatpush1.bf16.msra.mxu0 0
    %69 = vmatprep.subr.bf16.mxu0 0
    %70 = vmatpush1.bf16.msra.mxu0 0
    %71 = vmatprep.subr.bf16.mxu0 0
    %72 = vmatpush1.bf16.msra.mxu0 0
    %73 = vmatprep.subr.bf16.mxu0 0
    %74 = vmatpush1.bf16.msra.mxu0 0
    %75 = vmatprep.subr.bf16.mxu0 0
    %76 = vmatpush1.bf16.msra.mxu0 0
    %77 = vmatprep.subr.bf16.mxu0 0
    %78 = vmatpush1.bf16.msra.mxu0 0
    %79 = vmatprep.subr.bf16.mxu0 0
    %80 = vmatpush1.bf16.msra.mxu0 0
    %81 = vmatprep.subr.bf16.mxu0 0
    %82 = vmatpush1.bf16.msra.mxu0 0
    %83 = vmatprep.subr.bf16.mxu0 0
    %84 = vmatpush1.bf16.msra.mxu0 0
    %85 = vmatprep.subr.bf16.mxu0 0
    %86 = vmatpush1.bf16.msra.mxu0 0
    %87 = vmatprep.subr.bf16.mxu0 0
    %88 = vmatpush1.bf16.msra.mxu0 0
    %89 = vmatprep.subr.bf16.mxu0 0
    %90 = vmatpush1.bf16.msra.mxu0 0
    %91 = vmatprep.subr.bf16.mxu0 0
    %92 = vmatpush1.bf16.msra.mxu0 0
    %93 = vmatprep.subr.bf16.mxu0 0
    %94 = vmatpush1.bf16.msra.mxu0 0
    %95 = vmatprep.subr.bf16.mxu0 0
    %96 = vmatpush1.bf16.msra.mxu0 0
    %97 = vmatprep.mubr.bf16.mxu0 0
    %98 = vmatmul.mubr.bf16.gmra.mrb[0].mxu0 %v63
    %v99 = vpop.f32.mrb[0].mxu0
    %v100 = vadd.f32 %v48, %v99
    %v101 = vpop.f32.mrb[0].mxu0
    %v102 = vpop.f32.mrb[0].mxu0
    %v103 = vadd.f32 %v48, %v102
    %v104 = vpop.f32.mrb[0].mxu0
    %105 = vdwg.mxu0
    %v106 = vmax.f32 %v100, 0.0
    %v107 = vmax.f32 %v103, 0.0
    %v108 = vpack.c.bf16 %v106, %v106
    %v109 = vpack.c.bf16 %v107, %v107
    %111 = vrot.lane.b32.xlu0 %v108, 96
    %v112 = vpop.permute.xlu0 %111
    %113 = vrot.lane.b32.xlu0 %v108, 64
    %v114 = vpop.permute.xlu0 %113
    %vm115 = vcmask 261120
    %v117 = vsel %vm115, %v112, 0
    %v120 = vsel %vm115, %v114, 0
    %122 = vmatprep.subr.bf16.mxu0 0
    %123 = vmatpush1.bf16.xpose.msra.mxu0 %v120
    %124 = vmatprep.subr.bf16.mxu0 0
    %125 = vmatpush1.bf16.xpose.msra.mxu0 0
    %126 = vmatprep.subr.bf16.mxu0 0
    %127 = vmatpush1.bf16.xpose.msra.mxu0 0
    %128 = vmatprep.subr.bf16.mxu0 0
    %129 = vmatpush1.bf16.xpose.msra.mxu0 0
    %130 = vmatprep.subr.bf16.mxu0 0
    %131 = vmatpush1.bf16.xpose.msra.mxu0 0
    %132 = vmatprep.subr.bf16.mxu0 0
    %133 = vmatpush1.bf16.xpose.msra.mxu0 0
    %134 = vmatprep.subr.bf16.mxu0 0
    %135 = vmatpush1.bf16.xpose.msra.mxu0 0
    %136 = vmatprep.subr.bf16.mxu0 0
    %137 = vmatpush1.bf16.xpose.msra.mxu0 0
    %138 = vmatprep.subr.bf16.mxu0 0
    %139 = vmatpush1.bf16.xpose.msra.mxu0 0
    %140 = vmatprep.subr.bf16.mxu0 0
    %141 = vmatpush1.bf16.xpose.msra.mxu0 0
    %142 = vmatprep.subr.bf16.mxu0 0
    %143 = vmatpush1.bf16.xpose.msra.mxu0 0
    %144 = vmatprep.subr.bf16.mxu0 0
    %145 = vmatpush1.bf16.xpose.msra.mxu0 0
    %146 = vmatprep.subr.bf16.mxu0 0
    %147 = vmatpush1.bf16.xpose.msra.mxu0 0
    %148 = vmatprep.subr.bf16.mxu0 0
    %149 = vmatpush1.bf16.xpose.msra.mxu0 0
    %150 = vmatprep.subr.bf16.mxu0 0
    %151 = vmatpush1.bf16.xpose.msra.mxu0 0
    %152 = vmatprep.subr.bf16.mxu0 0
    %153 = vmatpush1.bf16.xpose.msra.mxu0 0
    %154 = vmatprep.mubr.bf16.mxu0 0
    %155 = vmatmul.mubr.bf16.gmra.mrb[0].mxu0 %v117
    %v156 = vpop.f32.mrb[0].mxu0
    %v157 = vadd.f32 0.0, %v156
    %v158 = vpop.f32.mrb[0].mxu0
    %v159 = vpop.f32.mrb[0].mxu0
    %v160 = vpop.f32.mrb[0].mxu0
    %161 = vdwg.mxu0
    %163 = vrot.lane.b32.xlu0 %v109, 96
    %v164 = vpop.permute.xlu0 %163
    %165 = vrot.lane.b32.xlu0 %v109, 64
    %v166 = vpop.permute.xlu0 %165
    %v168 = vsel %vm115, %v164, 0
    %v171 = vsel %vm115, %v166, 0
    %173 = vmatprep.subr.bf16.mxu0 0
    %174 = vmatpush1.bf16.xpose.msra.mxu0 %v171
    %175 = vmatprep.subr.bf16.mxu0 0
    %176 = vmatpush1.bf16.xpose.msra.mxu0 0
    %177 = vmatprep.subr.bf16.mxu0 0
    %178 = vmatpush1.bf16.xpose.msra.mxu0 0
    %179 = vmatprep.subr.bf16.mxu0 0
    %180 = vmatpush1.bf16.xpose.msra.mxu0 0
    %181 = vmatprep.subr.bf16.mxu0 0
    %182 = vmatpush1.bf16.xpose.msra.mxu0 0
    %183 = vmatprep.subr.bf16.mxu0 0
    %184 = vmatpush1.bf16.xpose.msra.mxu0 0
    %185 = vmatprep.subr.bf16.mxu0 0
    %186 = vmatpush1.bf16.xpose.msra.mxu0 0
    %187 = vmatprep.subr.bf16.mxu0 0
    %188 = vmatpush1.bf16.xpose.msra.mxu0 0
    %189 = vmatprep.subr.bf16.mxu0 0
    %190 = vmatpush1.bf16.xpose.msra.mxu0 0
    %191 = vmatprep.subr.bf16.mxu0 0
    %192 = vmatpush1.bf16.xpose.msra.mxu0 0
    %193 = vmatprep.subr.bf16.mxu0 0
    %194 = vmatpush1.bf16.xpose.msra.mxu0 0
    %195 = vmatprep.subr.bf16.mxu0 0
    %196 = vmatpush1.bf16.xpose.msra.mxu0 0
    %197 = vmatprep.subr.bf16.mxu0 0
    %198 = vmatpush1.bf16.xpose.msra.mxu0 0
    %199 = vmatprep.subr.bf16.mxu0 0
    %200 = vmatpush1.bf16.xpose.msra.mxu0 0
    %201 = vmatprep.subr.bf16.mxu0 0
    %202 = vmatpush1.bf16.xpose.msra.mxu0 0
    %203 = vmatprep.subr.bf16.mxu0 0
    %204 = vmatpush1.bf16.xpose.msra.mxu0 0
    %205 = vmatprep.mubr.bf16.mxu0 0
    %206 = vmatmul.mubr.bf16.gmra.mrb[0].mxu0 %v168
    %v207 = vpop.f32.mrb[0].mxu0
    %v208 = vadd.f32 0.0, %v207
    %v209 = vpop.f32.mrb[0].mxu0
    %v210 = vpop.f32.mrb[0].mxu0
    %v211 = vpop.f32.mrb[0].mxu0
    %212 = vdwg.mxu0
    %v213 = vld [vmem:[%s1] sm:$0xff]
    %v214 = vld [vmem:[%s1 + $0x8] sm:$0xff]
    %vm215 = vcmp.ne.f32.partialorder %v213, 0.0
    %vm216 = vcmp.ne.f32.partialorder %v214, 0.0
    %v217 = vsel %vm215, %v157, -9e+15
    %v218 = vsel %vm216, %v208, -9e+15
    %vm219 = vcmask 64512
    %v220 = vsel %vm219, %v217, -inf
    %221 = vmax.xlane.f32.xlu0 %v220
    %v222 = vpop.xlane.xlu0 %221
    %v223 = vsel %vm219, %v218, -inf
    %224 = vmax.xlane.f32.xlu0 %v223
    %v225 = vpop.xlane.xlu0 %224
    %v226 = vsub.f32 %v217, %v222
    %v227 = vsub.f32 %v218, %v225
    %v228 = vmul.f32 %v226, 1.442695
    %v229 = vpow.pop %v228
    %v230 = vmul.f32 %v227, 1.442695
    %v231 = vpow.pop %v230
    %v232 = vsel %vm219, %v229, 0.0
    %233 = vadd.xlane.f32.xlu0 %v232
    %v234 = vpop.xlane.xlu0 %233
    %v235 = vsel %vm219, %v231, 0.0
    %236 = vadd.xlane.f32.xlu0 %v235
    %v237 = vpop.xlane.xlu0 %236
    %v238 = vrcp.pop %v234
    %v239 = vrcp.pop %v237
    %v240 = vmul.f32 %v229, %v238
    %v241 = vmul.f32 %v231, %v239
    %v242 = vpack.c.bf16 %v240, %v240
    %v243 = vpack.c.bf16 %v241, %v241
    %v245 = vsel %vm219, %v242, 0
    %vm247 = vcmask 1043456
    %v249 = vsel %vm247, %v108, 0
    %251 = vmatprep.subr.bf16.mxu0 0
    %252 = vmatpush1.bf16.msra.mxu0 %v249
    %253 = vmatprep.subr.bf16.mxu0 0
    %254 = vmatpush1.bf16.msra.mxu0 0
    %255 = vmatprep.subr.bf16.mxu0 0
    %256 = vmatpush1.bf16.msra.mxu0 0
    %257 = vmatprep.subr.bf16.mxu0 0
    %258 = vmatpush1.bf16.msra.mxu0 0
    %259 = vmatprep.subr.bf16.mxu0 0
    %260 = vmatpush1.bf16.msra.mxu0 0
    %261 = vmatprep.subr.bf16.mxu0 0
    %262 = vmatpush1.bf16.msra.mxu0 0
    %263 = vmatprep.subr.bf16.mxu0 0
    %264 = vmatpush1.bf16.msra.mxu0 0
    %265 = vmatprep.subr.bf16.mxu0 0
    %266 = vmatpush1.bf16.msra.mxu0 0
    %267 = vmatprep.subr.bf16.mxu0 0
    %268 = vmatpush1.bf16.msra.mxu0 0
    %269 = vmatprep.subr.bf16.mxu0 0
    %270 = vmatpush1.bf16.msra.mxu0 0
    %271 = vmatprep.subr.bf16.mxu0 0
    %272 = vmatpush1.bf16.msra.mxu0 0
    %273 = vmatprep.subr.bf16.mxu0 0
    %274 = vmatpush1.bf16.msra.mxu0 0
    %275 = vmatprep.subr.bf16.mxu0 0
    %276 = vmatpush1.bf16.msra.mxu0 0
    %277 = vmatprep.subr.bf16.mxu0 0
    %278 = vmatpush1.bf16.msra.mxu0 0
    %279 = vmatprep.subr.bf16.mxu0 0
    %280 = vmatpush1.bf16.msra.mxu0 0
    %281 = vmatprep.subr.bf16.mxu0 0
    %282 = vmatpush1.bf16.msra.mxu0 0
    %283 = vmatprep.mubr.bf16.mxu0 0
    %284 = vmatmul.mubr.bf16.gmra.mrb[0].mxu0 %v245
    %v285 = vpop.f32.mrb[0].mxu0
    %v286 = vadd.f32 0.0, %v285
    %v287 = vpop.f32.mrb[0].mxu0
    %v288 = vpop.f32.mrb[0].mxu0
    %v289 = vpop.f32.mrb[0].mxu0
    %290 = vdwg.mxu0
    %v292 = vsel %vm219, %v243, 0
    %v295 = vsel %vm247, %v109, 0
    %297 = vmatprep.subr.bf16.mxu0 0
    %298 = vmatpush1.bf16.msra.mxu0 %v295
    %299 = vmatprep.subr.bf16.mxu0 0
    %300 = vmatpush1.bf16.msra.mxu0 0
    %301 = vmatprep.subr.bf16.mxu0 0
    %302 = vmatpush1.bf16.msra.mxu0 0
    %303 = vmatprep.subr.bf16.mxu0 0
    %304 = vmatpush1.bf16.msra.mxu0 0
    %305 = vmatprep.subr.bf16.mxu0 0
    %306 = vmatpush1.bf16.msra.mxu0 0
    %307 = vmatprep.subr.bf16.mxu0 0
    %308 = vmatpush1.bf16.msra.mxu0 0
    %309 = vmatprep.subr.bf16.mxu0 0
    %310 = vmatpush1.bf16.msra.mxu0 0
    %311 = vmatprep.subr.bf16.mxu0 0
    %312 = vmatpush1.bf16.msra.mxu0 0
    %313 = vmatprep.subr.bf16.mxu0 0
    %314 = vmatpush1.bf16.msra.mxu0 0
    %315 = vmatprep.subr.bf16.mxu0 0
    %316 = vmatpush1.bf16.msra.mxu0 0
    %317 = vmatprep.subr.bf16.mxu0 0
    %318 = vmatpush1.bf16.msra.mxu0 0
    %319 = vmatprep.subr.bf16.mxu0 0
    %320 = vmatpush1.bf16.msra.mxu0 0
    %321 = vmatprep.subr.bf16.mxu0 0
    %322 = vmatpush1.bf16.msra.mxu0 0
    %323 = vmatprep.subr.bf16.mxu0 0
    %324 = vmatpush1.bf16.msra.mxu0 0
    %325 = vmatprep.subr.bf16.mxu0 0
    %326 = vmatpush1.bf16.msra.mxu0 0
    %327 = vmatprep.subr.bf16.mxu0 0
    %328 = vmatpush1.bf16.msra.mxu0 0
    %329 = vmatprep.mubr.bf16.mxu0 0
    %330 = vmatmul.mubr.bf16.gmra.mrb[0].mxu0 %v292
    %v331 = vpop.f32.mrb[0].mxu0
    %v332 = vadd.f32 0.0, %v331
    %v333 = vpop.f32.mrb[0].mxu0
    %v334 = vpop.f32.mrb[0].mxu0
    %v335 = vpop.f32.mrb[0].mxu0
    %336 = vdwg.mxu0
    %v337 = vpack.c.bf16 %v332, %v286
    %v338 = vld [vmem:[%s4] sm:$0xf]
    %v339 = vld [vmem:[%s4 + $0x4] sm:$0xf]
    %v340 = vld [vmem:[%s4 + $0x8] sm:$0xf]
    %v341 = vld [vmem:[%s4 + $0xc] sm:$0xf]
    %v342 = vld [vmem:[%s5] sm:$0x1]
    %v344 = vlaneseq
    %v345 = vshrl.u32 %v344, 7
    %v346 = vsub.s32 0, %v345
    %v347 = vrot.slane %v342, %v346
    %v353 = vunpack.c.l.b16 %v338
    %v354 = vunpack.c.l.b16 %v339
    %v355 = vunpack.c.l.b16 %v340
    %v356 = vunpack.c.l.b16 %v341
    %v357 = vpack.c.b16 %v354, %v353
    %v358 = vpack.c.b16 %v356, %v355
    %v362 = vsel %vm115, %v337, 0
    %364 = vmatprep.subr.bf16.mxu0 0
    %365 = vmatpush1.bf16.msra.mxu0 %v357
    %366 = vmatprep.subr.bf16.mxu0 0
    %367 = vmatpush1.bf16.msra.mxu0 %v358
    %368 = vmatprep.subr.bf16.mxu0 0
    %369 = vmatpush1.bf16.msra.mxu0 0
    %370 = vmatprep.subr.bf16.mxu0 0
    %371 = vmatpush1.bf16.msra.mxu0 0
    %372 = vmatprep.subr.bf16.mxu0 0
    %373 = vmatpush1.bf16.msra.mxu0 0
    %374 = vmatprep.subr.bf16.mxu0 0
    %375 = vmatpush1.bf16.msra.mxu0 0
    %376 = vmatprep.subr.bf16.mxu0 0
    %377 = vmatpush1.bf16.msra.mxu0 0
    %378 = vmatprep.subr.bf16.mxu0 0
    %379 = vmatpush1.bf16.msra.mxu0 0
    %380 = vmatprep.subr.bf16.mxu0 0
    %381 = vmatpush1.bf16.msra.mxu0 0
    %382 = vmatprep.subr.bf16.mxu0 0
    %383 = vmatpush1.bf16.msra.mxu0 0
    %384 = vmatprep.subr.bf16.mxu0 0
    %385 = vmatpush1.bf16.msra.mxu0 0
    %386 = vmatprep.subr.bf16.mxu0 0
    %387 = vmatpush1.bf16.msra.mxu0 0
    %388 = vmatprep.subr.bf16.mxu0 0
    %389 = vmatpush1.bf16.msra.mxu0 0
    %390 = vmatprep.subr.bf16.mxu0 0
    %391 = vmatpush1.bf16.msra.mxu0 0
    %392 = vmatprep.subr.bf16.mxu0 0
    %393 = vmatpush1.bf16.msra.mxu0 0
    %394 = vmatprep.subr.bf16.mxu0 0
    %395 = vmatpush1.bf16.msra.mxu0 0
    %396 = vmatprep.mubr.bf16.mxu0 0
    %397 = vmatmul.mubr.bf16.gmra.mrb[0].mxu0 %v362
    %v398 = vpop.f32.mrb[0].mxu0
    %v399 = vadd.f32 %v347, %v398
    %v400 = vpop.f32.mrb[0].mxu0
    %v401 = vpop.f32.mrb[0].mxu0
    %v402 = vadd.f32 %v347, %v401
    %v403 = vpop.f32.mrb[0].mxu0
    %404 = vdwg.mxu0
    %v405 = vmax.f32 %v399, 0.0
    %v406 = vmax.f32 %v402, 0.0
    %407 = vst.msk [vmem:[#allocation5] sm:$0xff] %vm61, %v405
    %408 = vst.msk [vmem:[#allocation5 + $0x8] sm:$0xff] %vm61, %v406
    // Predicated region
    $region30: #{tpu_custom_call.1} parent=1 // pred_check
      _
    $region31: #{tpu_custom_call.1} parent=1 // pred_check_branch
      %410 = sbr.rel (0) target = $region33
    $region32: #{tpu_custom_call.1} parent=1 // pred_region
      %s412 = ssub.s32 256, 256
      %413 = vsyncadd [#allocation4], %s412
      %s414 = sshll.u32 [#allocation5], 4
      %s415 = int_to_ptr.vmem [resolvable:$true] %s414
      %420 = dma.vmem_to_hbm [thread:$0]  %s415, 256, %s6, [#allocation4], 128, 128, 8
    $region33: #{tpu_custom_call.1} parent=1 // pred_fallthru
      _
    // Predicated region
    $region34: #{tpu_custom_call.1} parent=1 // pred_check
      _
    $region35: #{tpu_custom_call.1} parent=1 // pred_check_branch
      %422 = sbr.rel (0) target = $region37
    $region36: #{tpu_custom_call.1} parent=1 // pred_region
      %423 = dma.done [#allocation4], 256
    $region37: #{tpu_custom_call.1} parent=1 // pred_fallthru
      _
    %424 = vsyncpa [#allocation3], 1
    %425 = vsyncpa [#allocation4], 1

</llo_original>
